<compile_context>
chip_gen: v7x
topology: tpu7x:2x2x1
jax: 0.10.0
libtpu: 0.0.40
codegen_flags: <defaults>
</compile_context>

<pallas_src>
import jax
import jax.numpy as jnp
from jax import lax
from jax.experimental import pallas as pl
from jax.experimental.pallas import tpu as pltpu
import numpy as np

SELU_ALPHA = 1.6732632423543772
SELU_LAMBDA = 1.0507009873554805
BN_EPS = 1e-5


def _selu(x):
    return SELU_LAMBDA * jnp.where(x > 0, x, SELU_ALPHA * (jnp.exp(x) - 1.0))


# --------------------------------------------------------------------------- #
# One-time, host-side (numpy) slab construction.  Fixed weights -> build once,
# reuse across calls; nothing here is re-emitted per step.
# --------------------------------------------------------------------------- #
def build_residual_block_slabs(p, W, matmul_dtype=jnp.bfloat16):
    w1 = np.asarray(p['w1'], np.float32)          # (C1, C0, 2, 3)
    w2 = np.asarray(p['w2'], np.float32)          # (C1, C1, 2, 3)
    wd = np.asarray(p['wd'], np.float32)          # (C1, C0, 1, 3)
    b1 = np.asarray(p['b1'], np.float32)
    b2 = np.asarray(p['b2'], np.float32)
    bd = np.asarray(p['bd'], np.float32)
    gamma = np.asarray(p['bn2_gamma'], np.float32)
    beta = np.asarray(p['bn2_beta'], np.float32)
    mean = np.asarray(p['bn2_mean'], np.float32)
    var = np.asarray(p['bn2_var'], np.float32)

    C1, C0 = w1.shape[0], w1.shape[1]
    Wpool = W // 3

    # ---- fold eval-mode bn2 into conv1 (per-output-channel affine) ----------
    scale = gamma / np.sqrt(var + BN_EPS)
    shift = beta - mean * scale
    w1f = w1 * scale[:, None, None, None]
    b1f = b1 * scale + shift

    # ---- banded (Toeplitz) weight matrices ----------------------------------
    # lane index: j_in = w_in*Cin + ci , j_out = w_out*Cout + co.  The band offset
    # encodes kw; the W-padding of 1 becomes band clipping (no explicit padding).
    def band(w_kh):                               # (Cout, Cin, 3) -> (W*Cin, W*Cout)
        cout, cin, _ = w_kh.shape
        t = np.zeros((W * cin, W * cout), np.float32)
        for kw in range(3):                       # w_in = w_out + kw - 1
            s = np.eye(W, k=1 - kw, dtype=np.float32)
            t += np.kron(s, w_kh[:, :, kw].T)
        return t

    # Column permutation so the three MaxPool taps land in contiguous lane groups:
    #   new column  r*Q + k*C1 + co  <-  old column (3k + r)*C1 + co
    perm = np.asarray([(3 * k + r) * C1 + co
                       for r in range(3) for k in range(Wpool) for co in range(C1)],
                      dtype=np.int64)

    w1a = band(w1f[:, :, 0, :])                   # conv1 kh=0 (bn2 folded)  (WC0, WC1)
    w1b = band(w1f[:, :, 1, :])                   # conv1 kh=1               (WC0, WC1)
    w2a = band(w2[:, :, 0, :])[:, perm]           # conv2 kh=0               (WC1, P3)
    w2b = band(w2[:, :, 1, :])[:, perm]           # conv2 kh=1               (WC1, P3)
    wdm = band(wd[:, :, 0, :])[:, perm]           # 1x3 downsample           (WC0, P3)

    b1_lane = np.tile(b1f, W).reshape(1, W * C1)
    b2_lane = np.tile(b2 + bd, 3 * Wpool).reshape(1, 3 * Wpool * C1)

    return {
        'w1a': jnp.asarray(w1a, matmul_dtype),
        'w1b': jnp.asarray(w1b, matmul_dtype),
        'w2a': jnp.asarray(w2a, matmul_dtype),
        'w2b': jnp.asarray(w2b, matmul_dtype),
        'wdm': jnp.asarray(wdm, matmul_dtype),
        'b1': jnp.asarray(b1_lane, jnp.float32),
        'b2': jnp.asarray(b2_lane, jnp.float32),
    }


def _default_m_blocks(N):
    """v7x has 2 TensorCores per chip -> split the batch; single-TC chips keep 1."""
    try:
        kind = jax.devices()[0].device_kind.lower()
    except Exception:
        return 1
    if 'v7' in kind and N % 2 == 0:
        return 2
    return 1


# --------------------------------------------------------------------------- #
# Per-call apply: NCHW in / NCHW out.
# --------------------------------------------------------------------------- #
def residual_block_apply(x_nchw, slabs, *, m_blocks=None):
    N, C0, H, W = x_nchw.shape
    WC0 = W * C0
    WC1 = slabs['w1a'].shape[1]
    C1 = WC1 // W
    Wpool = W // 3
    Q = Wpool * C1                                # pooled lane width
    P3 = 3 * Q                                    # conv2/downsample width after perm
    M = N * H
    cdt = slabs['w1a'].dtype                      # matmul operand dtype (bf16 or f32)
    f32 = jnp.float32

    if m_blocks is None:
        m_blocks = _default_m_blocks(N)
    if m_blocks < 1 or N % m_blocks != 0 or (M // m_blocks) % 8 != 0:
        m_blocks = 1                              # keep blocks sample- & sublane-aligned
    block_m = M // m_blocks

    # lane-dense input layout: (N*H, W*C0), w-major / c-minor on lanes
    x2d = jnp.transpose(x_nchw, (0, 2, 3, 1)).reshape(M, WC0).astype(cdt)

    def kernel(x_ref, w1a_ref, w1b_ref, w2a_ref, w2b_ref, wd_ref,
               b1_ref, b2_ref, out_ref):
        x = x_ref[...]                            # (block_m, WC0), matmul dtype

        # conv1 (+ folded bn2): one wide-K Toeplitz dot per kh tap, f32 accumulation.
        d0 = jnp.dot(x, w1a_ref[...], preferred_element_type=f32)
        d1 = jnp.dot(x, w1b_ref[...], preferred_element_type=f32)

        # conv1's kh taps / H-padding as per-sample row shifts: XLU sublane rolls
        # plus a VPU boundary mask that zeroes the per-sample seam rows
        # (replaces the former O(M^2) shift-matrix matmuls).
        row = lax.broadcasted_iota(jnp.int32, (block_m, WC1), 0)
        d0_dn = jnp.where(row % H == 0, 0.0,
                          pltpu.roll(d0, shift=1, axis=0))            # row r <- r-1
        d1_up = jnp.where(row % H == H - 1, 0.0,
                          pltpu.roll(d1, shift=block_m - 1, axis=0))   # row r <- r+1

        # Row set A = conv1 output rows 0..H-1, row set B = rows 1..H
        # (exactly the two row windows conv2's kh taps consume).
        bias1 = b1_ref[...]
        h_a = _selu(d0_dn + d1 + bias1).astype(cdt)   # (block_m, WC1)
        h_b = _selu(d0 + d1_up + bias1).astype(cdt)

        # conv2 (kh=0,1) + downsample + residual add, one accumulation chain.
        # Output columns are pre-permuted so the three pool taps are contiguous.
        y = (jnp.dot(h_a, w2a_ref[...], preferred_element_type=f32)
             + jnp.dot(h_b, w2b_ref[...], preferred_element_type=f32)
             + jnp.dot(x, wd_ref[...], preferred_element_type=f32)
             + b2_ref[...])                       # (block_m, 3*Q) f32

        # MaxPool2d((1,3)): elementwise max of the three lane groups,
        # then a single lane-dense store.
        pooled = jnp.maximum(jnp.maximum(y[:, 0:Q], y[:, Q:2 * Q]), y[:, 2 * Q:3 * Q])
        out_ref[...] = pooled.astype(out_ref.dtype)

    def const(shape):                             # weights/biases: same block every step
        return pl.BlockSpec(shape, lambda i: (0,) * len(shape))

    out2d = pl.pallas_call(
        kernel,
        out_shape=jax.ShapeDtypeStruct((M, Q), f32),
        grid=(m_blocks,),                         # sample-aligned M blocks (1 on v5e/v6e)
        in_specs=[pl.BlockSpec((block_m, WC0), lambda i: (i, 0)),
                  const((WC0, WC1)), const((WC0, WC1)),
                  const((WC1, P3)), const((WC1, P3)),
                  const((WC0, P3)),
                  const((1, WC1)), const((1, P3))],
        out_specs=pl.BlockSpec((block_m, Q), lambda i: (i, 0)),
        compiler_params=pltpu.CompilerParams(
            dimension_semantics=("parallel",) if m_blocks > 1 else ("arbitrary",)),
    )(x2d, slabs['w1a'], slabs['w1b'], slabs['w2a'], slabs['w2b'], slabs['wdm'],
      slabs['b1'], slabs['b2'])

    return out2d.reshape(N, H, Wpool, C1).transpose(0, 3, 1, 2)   # back to NCHW


def residual_block(x_nchw, p, *, matmul_dtype=jnp.bfloat16, m_blocks=None):
    """Convenience wrapper (builds slabs every call; prefer build-once + apply)."""
    slabs = build_residual_block_slabs(p, x_nchw.shape[3], matmul_dtype)
    return residual_block_apply(x_nchw, slabs, m_blocks=m_blocks)


# --------------------------------------------------------------------------- #
# Pure-JAX reference matching the PyTorch forward (eval-mode bn2).
# --------------------------------------------------------------------------- #
def reference(x_nchw, p):
    dn = ('NCHW', 'OIHW', 'NCHW')
    bc = lambda v: v[None, :, None, None]
    out = lax.conv_general_dilated(x_nchw, p['w1'], (1, 1), ((1, 1), (1, 1)),
                                   dimension_numbers=dn) + bc(p['b1'])
    out = (out - bc(p['bn2_mean'])) * lax.rsqrt(bc(p['bn2_var']) + BN_EPS) \
          * bc(p['bn2_gamma']) + bc(p['bn2_beta'])
    out = _selu(out)
    out = lax.conv_general_dilated(out, p['w2'], (1, 1), ((0, 0), (1, 1)),
                                   dimension_numbers=dn) + bc(p['b2'])
    iden = lax.conv_general_dilated(x_nchw, p['wd'], (1, 1), ((0, 0), (1, 1)),
                                    dimension_numbers=dn) + bc(p['bd'])
    out = out + iden
    N, C, Hh, Ww = out.shape
    out = out[..., :(Ww // 3) * 3].reshape(N, C, Hh, Ww // 3, 3).max(axis=-1)
    return out


if __name__ == "__main__":
    N, C0, C1, H, W = 2, 4, 8, 16, 24   # nb_filts = [4, 8] -> downsample path active
    key = jax.random.PRNGKey(0)
    ks = jax.random.split(key, 11)
    x = jax.random.normal(ks[0], (N, C0, H, W), jnp.float32)
    params = {
        'w1': 0.2 * jax.random.normal(ks[1], (C1, C0, 2, 3), jnp.float32),
        'b1': 0.1 * jax.random.normal(ks[2], (C1,), jnp.float32),
        'w2': 0.2 * jax.random.normal(ks[3], (C1, C1, 2, 3), jnp.float32),
        'b2': 0.1 * jax.random.normal(ks[4], (C1,), jnp.float32),
        'wd': 0.2 * jax.random.normal(ks[5], (C1, C0, 1, 3), jnp.float32),
        'bd': 0.1 * jax.random.normal(ks[6], (C1,), jnp.float32),
        'bn2_gamma': 1.0 + 0.1 * jax.random.normal(ks[7], (C1,), jnp.float32),
        'bn2_beta': 0.1 * jax.random.normal(ks[8], (C1,), jnp.float32),
        'bn2_mean': 0.1 * jax.random.normal(ks[9], (C1,), jnp.float32),
        'bn2_var': 0.5 + jax.random.uniform(ks[10], (C1,), jnp.float32),
    }

    # Build the weight slabs ONCE (host-side numpy), jit only the apply path.
    slabs_bf16 = build_residual_block_slabs(params, W, matmul_dtype=jnp.bfloat16)
    slabs_f32 = build_residual_block_slabs(params, W, matmul_dtype=jnp.float32)
    apply_fn = jax.jit(residual_block_apply, static_argnames=("m_blocks",))

    out_bf16 = jax.block_until_ready(apply_fn(x, slabs_bf16))
    out_f32 = jax.block_until_ready(apply_fn(x, slabs_f32))
    ref = jax.block_until_ready(reference(x, params))

    assert out_bf16.shape == (N, C1, H, W // 3), out_bf16.shape
    # f32 matmul operands: tight structural check against the reference.
    np.testing.assert_allclose(np.asarray(out_f32), np.asarray(ref), rtol=1e-3, atol=1e-3)
    # bf16 matmul operands (f32 accumulation): bf16-level tolerance.
    np.testing.assert_allclose(np.asarray(out_bf16), np.asarray(ref), rtol=2e-2, atol=4e-2)
    print("KERNEL_OK")
</pallas_src>

<mosaic_0001>
module attributes {stable_mosaic.version = 11 : i64} {
  func.func @kernel(%arg0: i32, %arg1: memref<32x96xbf16, #tpu.memory_space<vmem>>, %arg2: memref<96x192xbf16, #tpu.memory_space<vmem>>, %arg3: memref<96x192xbf16, #tpu.memory_space<vmem>>, %arg4: memref<192x192xbf16, #tpu.memory_space<vmem>>, %arg5: memref<192x192xbf16, #tpu.memory_space<vmem>>, %arg6: memref<96x192xbf16, #tpu.memory_space<vmem>>, %arg7: memref<1x192xf32, #tpu.memory_space<vmem>>, %arg8: memref<1x192xf32, #tpu.memory_space<vmem>>, %arg9: memref<32x64xf32, #tpu.memory_space<vmem>>) attributes {dimension_semantics = [#tpu.dimension_semantics<arbitrary>], iteration_bounds = array<i64: 1>, scalar_prefetch = 0 : i64, scratch_operands = 0 : i64, tpu.core_type = #tpu.core_type<tc>, window_params = [{transform_indices = @transform_0, window_bounds = array<i64: 32, 96>}, {pipeline_mode = #tpu.pipeline_mode<synchronous>, transform_indices = @transform_1, window_bounds = array<i64: 96, 192>}, {pipeline_mode = #tpu.pipeline_mode<synchronous>, transform_indices = @transform_2, window_bounds = array<i64: 96, 192>}, {pipeline_mode = #tpu.pipeline_mode<synchronous>, transform_indices = @transform_3, window_bounds = array<i64: 192, 192>}, {pipeline_mode = #tpu.pipeline_mode<synchronous>, transform_indices = @transform_4, window_bounds = array<i64: 192, 192>}, {pipeline_mode = #tpu.pipeline_mode<synchronous>, transform_indices = @transform_5, window_bounds = array<i64: 96, 192>}, {pipeline_mode = #tpu.pipeline_mode<synchronous>, transform_indices = @transform_6, window_bounds = array<i64: 1, 192>}, {pipeline_mode = #tpu.pipeline_mode<synchronous>, transform_indices = @transform_7, window_bounds = array<i64: 1, 192>}, {transform_indices = @transform_8, window_bounds = array<i64: 32, 64>}]} {
    %c0 = arith.constant 0 : index
    %c0_0 = arith.constant 0 : index
    %0 = vector.load %arg1[%c0, %c0_0] : memref<32x96xbf16, #tpu.memory_space<vmem>>, vector<32x96xbf16>
    %c0_1 = arith.constant 0 : index
    %c0_2 = arith.constant 0 : index
    %1 = vector.load %arg2[%c0_1, %c0_2] : memref<96x192xbf16, #tpu.memory_space<vmem>>, vector<96x192xbf16>
    %cst = arith.constant dense<0.000000e+00> : vector<32x192xf32>
    %2 = tpu.matmul %0, %1, %cst {dimension_numbers = #tpu.dot_dimension_numbers<[1], [0], [0], [1], [0, 0, 1, 1], [], []>} : vector<32x96xbf16>, vector<96x192xbf16>, vector<32x192xf32> -> vector<32x192xf32>
    %c0_3 = arith.constant 0 : index
    %c0_4 = arith.constant 0 : index
    %3 = vector.load %arg3[%c0_3, %c0_4] : memref<96x192xbf16, #tpu.memory_space<vmem>>, vector<96x192xbf16>
    %cst_5 = arith.constant dense<0.000000e+00> : vector<32x192xf32>
    %4 = tpu.matmul %0, %3, %cst_5 {dimension_numbers = #tpu.dot_dimension_numbers<[1], [0], [0], [1], [0, 0, 1, 1], [], []>} : vector<32x96xbf16>, vector<96x192xbf16>, vector<32x192xf32> -> vector<32x192xf32>
    %5 = tpu.iota {dimensions = array<i32: 0>} : vector<32x192xi32>
    %c16_i32 = arith.constant 16 : i32
    %c0_i32 = arith.constant 0 : i32
    %6 = arith.cmpi eq, %c16_i32, %c0_i32 : i32
    %c1_i32 = arith.constant 1 : i32
    %7 = arith.select %6, %c1_i32, %c16_i32 : i32
    %8 = vector.broadcast %7 : i32 to vector<32x192xi32>
    %9 = arith.remsi %5, %8 : vector<32x192xi32>
    %c0_i32_6 = arith.constant 0 : i32
    %10 = vector.broadcast %c0_i32_6 : i32 to vector<32x192xi32>
    %11 = arith.cmpi ne, %9, %10 : vector<32x192xi32>
    %c0_i32_7 = arith.constant 0 : i32
    %12 = vector.broadcast %c0_i32_7 : i32 to vector<32x192xi32>
    %13 = arith.cmpi slt, %9, %12 : vector<32x192xi32>
    %c0_i32_8 = arith.constant 0 : i32
    %14 = arith.cmpi slt, %7, %c0_i32_8 : i32
    %15 = vector.broadcast %14 : i1 to vector<32x192xi1>
    %16 = vector.broadcast %15 : vector<32x192xi1> to vector<32x192xi1>
    %17 = arith.xori %13, %16 : vector<32x192xi1>
    %18 = arith.andi %17, %11 : vector<32x192xi1>
    %19 = vector.broadcast %7 : i32 to vector<32x192xi32>
    %20 = arith.addi %9, %19 : vector<32x192xi32>
    %21 = arith.select %18, %20, %9 : vector<32x192xi1>, vector<32x192xi32>
    %c0_i32_9 = arith.constant 0 : i32
    %22 = vector.broadcast %c0_i32_9 : i32 to vector<32x192xi32>
    %23 = arith.cmpi eq, %21, %22 : vector<32x192xi32>
    %c1_i32_10 = arith.constant 1 : i32
    %24 = tpu.dynamic_rotate %2 by %c1_i32_10 dim 0 : vector<32x192xf32>, i32 -> vector<32x192xf32>
    %cst_11 = arith.constant 0.000000e+00 : f32
    %25 = vector.broadcast %cst_11 : f32 to vector<32x192xf32>
    %26 = arith.select %23, %25, %24 : vector<32x192xi1>, vector<32x192xf32>
    %c16_i32_12 = arith.constant 16 : i32
    %c0_i32_13 = arith.constant 0 : i32
    %27 = arith.cmpi eq, %c16_i32_12, %c0_i32_13 : i32
    %c1_i32_14 = arith.constant 1 : i32
    %28 = arith.select %27, %c1_i32_14, %c16_i32_12 : i32
    %29 = vector.broadcast %28 : i32 to vector<32x192xi32>
    %30 = arith.remsi %5, %29 : vector<32x192xi32>
    %c0_i32_15 = arith.constant 0 : i32
    %31 = vector.broadcast %c0_i32_15 : i32 to vector<32x192xi32>
    %32 = arith.cmpi ne, %30, %31 : vector<32x192xi32>
    %c0_i32_16 = arith.constant 0 : i32
    %33 = vector.broadcast %c0_i32_16 : i32 to vector<32x192xi32>
    %34 = arith.cmpi slt, %30, %33 : vector<32x192xi32>
    %c0_i32_17 = arith.constant 0 : i32
    %35 = arith.cmpi slt, %28, %c0_i32_17 : i32
    %36 = vector.broadcast %35 : i1 to vector<32x192xi1>
    %37 = vector.broadcast %36 : vector<32x192xi1> to vector<32x192xi1>
    %38 = arith.xori %34, %37 : vector<32x192xi1>
    %39 = arith.andi %38, %32 : vector<32x192xi1>
    %40 = vector.broadcast %28 : i32 to vector<32x192xi32>
    %41 = arith.addi %30, %40 : vector<32x192xi32>
    %42 = arith.select %39, %41, %30 : vector<32x192xi1>, vector<32x192xi32>
    %c15_i32 = arith.constant 15 : i32
    %43 = vector.broadcast %c15_i32 : i32 to vector<32x192xi32>
    %44 = arith.cmpi eq, %42, %43 : vector<32x192xi32>
    %c31_i32 = arith.constant 31 : i32
    %45 = tpu.dynamic_rotate %4 by %c31_i32 dim 0 : vector<32x192xf32>, i32 -> vector<32x192xf32>
    %cst_18 = arith.constant 0.000000e+00 : f32
    %46 = vector.broadcast %cst_18 : f32 to vector<32x192xf32>
    %47 = arith.select %44, %46, %45 : vector<32x192xi1>, vector<32x192xf32>
    %c0_19 = arith.constant 0 : index
    %c0_20 = arith.constant 0 : index
    %48 = vector.load %arg7[%c0_19, %c0_20] : memref<1x192xf32, #tpu.memory_space<vmem>>, vector<1x192xf32>
    %49 = arith.addf %26, %4 : vector<32x192xf32>
    %50 = vector.broadcast %48 : vector<1x192xf32> to vector<32x192xf32>
    %51 = arith.addf %49, %50 : vector<32x192xf32>
    %cst_21 = arith.constant 0.000000e+00 : f32
    %52 = vector.broadcast %cst_21 : f32 to vector<32x192xf32>
    %53 = arith.cmpf ogt, %51, %52 : vector<32x192xf32>
    %54 = math.exp %51 : vector<32x192xf32>
    %cst_22 = arith.constant 1.000000e+00 : f32
    %55 = vector.broadcast %cst_22 : f32 to vector<32x192xf32>
    %56 = arith.subf %54, %55 : vector<32x192xf32>
    %cst_23 = arith.constant 1.67326319 : f32
    %57 = vector.broadcast %cst_23 : f32 to vector<32x192xf32>
    %58 = arith.mulf %57, %56 : vector<32x192xf32>
    %59 = arith.select %53, %51, %58 : vector<32x192xi1>, vector<32x192xf32>
    %cst_24 = arith.constant 1.05070102 : f32
    %60 = vector.broadcast %cst_24 : f32 to vector<32x192xf32>
    %61 = arith.mulf %60, %59 : vector<32x192xf32>
    %62 = arith.truncf %61 : vector<32x192xf32> to vector<32x192xbf16>
    %63 = arith.addf %2, %47 : vector<32x192xf32>
    %64 = vector.broadcast %48 : vector<1x192xf32> to vector<32x192xf32>
    %65 = arith.addf %63, %64 : vector<32x192xf32>
    %cst_25 = arith.constant 0.000000e+00 : f32
    %66 = vector.broadcast %cst_25 : f32 to vector<32x192xf32>
    %67 = arith.cmpf ogt, %65, %66 : vector<32x192xf32>
    %68 = math.exp %65 : vector<32x192xf32>
    %cst_26 = arith.constant 1.000000e+00 : f32
    %69 = vector.broadcast %cst_26 : f32 to vector<32x192xf32>
    %70 = arith.subf %68, %69 : vector<32x192xf32>
    %cst_27 = arith.constant 1.67326319 : f32
    %71 = vector.broadcast %cst_27 : f32 to vector<32x192xf32>
    %72 = arith.mulf %71, %70 : vector<32x192xf32>
    %73 = arith.select %67, %65, %72 : vector<32x192xi1>, vector<32x192xf32>
    %cst_28 = arith.constant 1.05070102 : f32
    %74 = vector.broadcast %cst_28 : f32 to vector<32x192xf32>
    %75 = arith.mulf %74, %73 : vector<32x192xf32>
    %76 = arith.truncf %75 : vector<32x192xf32> to vector<32x192xbf16>
    %c0_29 = arith.constant 0 : index
    %c0_30 = arith.constant 0 : index
    %77 = vector.load %arg4[%c0_29, %c0_30] : memref<192x192xbf16, #tpu.memory_space<vmem>>, vector<192x192xbf16>
    %cst_31 = arith.constant dense<0.000000e+00> : vector<32x192xf32>
    %78 = tpu.matmul %62, %77, %cst_31 {dimension_numbers = #tpu.dot_dimension_numbers<[1], [0], [0], [1], [0, 0, 1, 1], [], []>} : vector<32x192xbf16>, vector<192x192xbf16>, vector<32x192xf32> -> vector<32x192xf32>
    %c0_32 = arith.constant 0 : index
    %c0_33 = arith.constant 0 : index
    %79 = vector.load %arg5[%c0_32, %c0_33] : memref<192x192xbf16, #tpu.memory_space<vmem>>, vector<192x192xbf16>
    %cst_34 = arith.constant dense<0.000000e+00> : vector<32x192xf32>
    %80 = tpu.matmul %76, %79, %cst_34 {dimension_numbers = #tpu.dot_dimension_numbers<[1], [0], [0], [1], [0, 0, 1, 1], [], []>} : vector<32x192xbf16>, vector<192x192xbf16>, vector<32x192xf32> -> vector<32x192xf32>
    %81 = arith.addf %78, %80 : vector<32x192xf32>
    %c0_35 = arith.constant 0 : index
    %c0_36 = arith.constant 0 : index
    %82 = vector.load %arg6[%c0_35, %c0_36] : memref<96x192xbf16, #tpu.memory_space<vmem>>, vector<96x192xbf16>
    %cst_37 = arith.constant dense<0.000000e+00> : vector<32x192xf32>
    %83 = tpu.matmul %0, %82, %cst_37 {dimension_numbers = #tpu.dot_dimension_numbers<[1], [0], [0], [1], [0, 0, 1, 1], [], []>} : vector<32x96xbf16>, vector<96x192xbf16>, vector<32x192xf32> -> vector<32x192xf32>
    %84 = arith.addf %81, %83 : vector<32x192xf32>
    %c0_38 = arith.constant 0 : index
    %c0_39 = arith.constant 0 : index
    %85 = vector.load %arg8[%c0_38, %c0_39] : memref<1x192xf32, #tpu.memory_space<vmem>>, vector<1x192xf32>
    %86 = vector.broadcast %85 : vector<1x192xf32> to vector<32x192xf32>
    %87 = arith.addf %84, %86 : vector<32x192xf32>
    %88 = vector.extract_strided_slice %87 {offsets = [0, 0], sizes = [32, 64], strides = [1, 1]} : vector<32x192xf32> to vector<32x64xf32>
    %89 = vector.extract_strided_slice %87 {offsets = [0, 64], sizes = [32, 64], strides = [1, 1]} : vector<32x192xf32> to vector<32x64xf32>
    %90 = arith.maximumf %88, %89 : vector<32x64xf32>
    %91 = vector.extract_strided_slice %87 {offsets = [0, 128], sizes = [32, 64], strides = [1, 1]} : vector<32x192xf32> to vector<32x64xf32>
    %92 = arith.maximumf %90, %91 : vector<32x64xf32>
    %c0_40 = arith.constant 0 : index
    %c0_41 = arith.constant 0 : index
    %93 = vector.load %arg9[%c0_40, %c0_41] : memref<32x64xf32, #tpu.memory_space<vmem>>, vector<32x64xf32>
    tpu.vector_store %arg9[%c0_40, %c0_41], %92 {strides = array<i32>} : memref<32x64xf32, #tpu.memory_space<vmem>>, vector<32x64xf32>,
    return
  }
  func.func @transform_0(%arg0: i32) -> (i32, i32) {
    %c0_i32 = arith.constant 0 : i32
    %c0_i32_0 = arith.constant 0 : i32
    return %arg0, %c0_i32 : i32, i32
  }
  func.func @transform_1(%arg0: i32) -> (i32, i32) {
    %c0_i32 = arith.constant 0 : i32
    %c0_i32_0 = arith.constant 0 : i32
    %c0_i32_1 = arith.constant 0 : i32
    return %c0_i32, %c0_i32_0 : i32, i32
  }
  func.func @transform_2(%arg0: i32) -> (i32, i32) {
    %c0_i32 = arith.constant 0 : i32
    %c0_i32_0 = arith.constant 0 : i32
    %c0_i32_1 = arith.constant 0 : i32
    return %c0_i32, %c0_i32_0 : i32, i32
  }
  func.func @transform_3(%arg0: i32) -> (i32, i32) {
    %c0_i32 = arith.constant 0 : i32
    %c0_i32_0 = arith.constant 0 : i32
    %c0_i32_1 = arith.constant 0 : i32
    return %c0_i32, %c0_i32_0 : i32, i32
  }
  func.func @transform_4(%arg0: i32) -> (i32, i32) {
    %c0_i32 = arith.constant 0 : i32
    %c0_i32_0 = arith.constant 0 : i32
    %c0_i32_1 = arith.constant 0 : i32
    return %c0_i32, %c0_i32_0 : i32, i32
  }
  func.func @transform_5(%arg0: i32) -> (i32, i32) {
    %c0_i32 = arith.constant 0 : i32
    %c0_i32_0 = arith.constant 0 : i32
    %c0_i32_1 = arith.constant 0 : i32
    return %c0_i32, %c0_i32_0 : i32, i32
  }
  func.func @transform_6(%arg0: i32) -> (i32, i32) {
    %c0_i32 = arith.constant 0 : i32
    %c0_i32_0 = arith.constant 0 : i32
    %c0_i32_1 = arith.constant 0 : i32
    return %c0_i32, %c0_i32_0 : i32, i32
  }
  func.func @transform_7(%arg0: i32) -> (i32, i32) {
    %c0_i32 = arith.constant 0 : i32
    %c0_i32_0 = arith.constant 0 : i32
    %c0_i32_1 = arith.constant 0 : i32
    return %c0_i32, %c0_i32_0 : i32, i32
  }
  func.func @transform_8(%arg0: i32) -> (i32, i32) {
    %c0_i32 = arith.constant 0 : i32
    %c0_i32_0 = arith.constant 0 : i32
    return %arg0, %c0_i32 : i32, i32
  }
}

</mosaic_0001>

<llo_original>
// kernel: residual_block_apply.1
$region0: #{residual_block_apply.1}
  #allocation0 [shape = 'u32[]', space=smem, size = 0x4, offset = 0x4, fixed_abs, tag = 'smem constant byte address 0x4 - core index']
  #allocation1 [shape = 'u32[144,128]{1,0:T(1,128)}', space=vmem, size = 0x12000, scoped, tag = 'internal scratch']
  %s0 = inlined_call_operand.vmem [shape: bf16[32,96], index: 0, kind: input, shape index: {}]
  %s1 = inlined_call_operand.vmem [shape: bf16[96,192], index: 1, kind: input, shape index: {}]
  %s2 = inlined_call_operand.hbm [shape: bf16[96,192], index: 2, kind: input, shape index: {}]
  %s3 = inlined_call_operand.vmem [shape: bf16[192,192], index: 3, kind: input, shape index: {}]
  %s4 = inlined_call_operand.vmem [shape: bf16[192,192], index: 4, kind: input, shape index: {}]
  %s5 = inlined_call_operand.vmem [shape: bf16[96,192], index: 5, kind: input, shape index: {}]
  %s6 = inlined_call_operand.vmem [shape: f32[1,192], index: 6, kind: input, shape index: {}]
  %s7 = inlined_call_operand.vmem [shape: f32[1,192], index: 7, kind: input, shape index: {}]
  %s8 = inlined_call_operand.vmem [shape: f32[32,64], index: 8, kind: output, shape index: {}]
  %s9 = sld [smem:[#allocation0]]
  $region46: #{residual_block_apply.1} parent=0
    _
  %s11 = ssub.s32 1, %s9
  %s12 = scalar_select 0, %s11, %s9
  $region1: #{residual_block_apply.1} parent=0
    #allocation2 [shape = 'u8[49152]{0}', space=vmem, size = 0xc000, scoped, tag = 'input window, operand 2, single buffered']
    #allocation3 [shape = 's32[1]{0}', space=sflag, size = 0x4, scoped, tag = 'scoped memory for residual_block_apply.1']
    %13 = vsyncpa [#allocation3], 0
    // Predicated region
    $region2: #{residual_block_apply.1} parent=1 // pred_check
      _
    $region3: #{residual_block_apply.1} parent=1 // pred_check_branch
      %15 = sbr.rel (0) target = $region5
    $region4: #{residual_block_apply.1} parent=1 // pred_region
      _
    $region5: #{residual_block_apply.1} parent=1 // pred_fallthru
      _
    // Predicated region
    $region6: #{residual_block_apply.1} parent=1 // pred_check
      _
    $region7: #{residual_block_apply.1} parent=1 // pred_check_branch
      %17 = sbr.rel (0) target = $region9
    $region8: #{residual_block_apply.1} parent=1 // pred_region
      _
    $region9: #{residual_block_apply.1} parent=1 // pred_fallthru
      _
    // Predicated region
    $region10: #{residual_block_apply.1} parent=1 // pred_check
      _
    $region11: #{residual_block_apply.1} parent=1 // pred_check_branch
      %19 = sbr.rel (0) target = $region13
    $region12: #{residual_block_apply.1} parent=1 // pred_region
      %s21 = ssub.s32 1536, 1536
      %22 = vsyncadd [#allocation3], %s21
      %s23 = sshll.u32 [#allocation2], 4
      %s24 = int_to_ptr.vmem [resolvable:$true] %s23
      %29 = dma.hbm_to_vmem [thread:$0]  %s2, 1536, %s24, [#allocation3], 128, 128, 8
    $region13: #{residual_block_apply.1} parent=1 // pred_fallthru
      _
    // Predicated region
    $region14: #{residual_block_apply.1} parent=1 // pred_check
      _
    $region15: #{residual_block_apply.1} parent=1 // pred_check_branch
      %31 = sbr.rel (0) target = $region17
    $region16: #{residual_block_apply.1} parent=1 // pred_region
      _
    $region17: #{residual_block_apply.1} parent=1 // pred_fallthru
      _
    // Predicated region
    $region18: #{residual_block_apply.1} parent=1 // pred_check
      _
    $region19: #{residual_block_apply.1} parent=1 // pred_check_branch
      %33 = sbr.rel (0) target = $region21
    $region20: #{residual_block_apply.1} parent=1 // pred_region
      _
    $region21: #{residual_block_apply.1} parent=1 // pred_fallthru
      _
    // Predicated region
    $region22: #{residual_block_apply.1} parent=1 // pred_check
      _
    $region23: #{residual_block_apply.1} parent=1 // pred_check_branch
      %35 = sbr.rel (0) target = $region25
    $region24: #{residual_block_apply.1} parent=1 // pred_region
      _
    $region25: #{residual_block_apply.1} parent=1 // pred_fallthru
      _
    // Predicated region
    $region26: #{residual_block_apply.1} parent=1 // pred_check
      _
    $region27: #{residual_block_apply.1} parent=1 // pred_check_branch
      %37 = sbr.rel (0) target = $region29
    $region28: #{residual_block_apply.1} parent=1 // pred_region
      _
    $region29: #{residual_block_apply.1} parent=1 // pred_fallthru
      _
    // Predicated region
    $region30: #{residual_block_apply.1} parent=1 // pred_check
      _
    $region31: #{residual_block_apply.1} parent=1 // pred_check_branch
      %39 = sbr.rel (0) target = $region33
    $region32: #{residual_block_apply.1} parent=1 // pred_region
      _
    $region33: #{residual_block_apply.1} parent=1 // pred_fallthru
      _
    // Predicated region
    $region34: #{residual_block_apply.1} parent=1 // pred_check
      _
    $region35: #{residual_block_apply.1} parent=1 // pred_check_branch
      %41 = sbr.rel (0) target = $region37
    $region36: #{residual_block_apply.1} parent=1 // pred_region
      %42 = dma.done [#allocation3], 1536
    $region37: #{residual_block_apply.1} parent=1 // pred_fallthru
      _
    %v44 = vld [vmem:[%s0] sm:$0xf]
    %v45 = vld [vmem:[%s0 + $0x4] sm:$0xf]
    %v46 = vld [vmem:[%s0 + $0x8] sm:$0xf]
    %v47 = vld [vmem:[%s0 + $0xc] sm:$0xf]
    %v48 = vld [vmem:[%s1] sm:$0xff]
    %v49 = vld [vmem:[%s1 + $0x8] sm:$0xff]
    %v50 = vld [vmem:[%s1 + $0x10] sm:$0xff]
    %v51 = vld [vmem:[%s1 + $0x18] sm:$0xff]
    %v52 = vld [vmem:[%s1 + $0x20] sm:$0xff]
    %v53 = vld [vmem:[%s1 + $0x28] sm:$0xff]
    %v54 = vld [vmem:[%s1 + $0x30] sm:$0xff]
    %v55 = vld [vmem:[%s1 + $0x38] sm:$0xff]
    %v56 = vld [vmem:[%s1 + $0x40] sm:$0xff]
    %v57 = vld [vmem:[%s1 + $0x48] sm:$0xff]
    %v58 = vld [vmem:[%s1 + $0x50] sm:$0xff]
    %v59 = vld [vmem:[%s1 + $0x58] sm:$0xff]
    %v64 = vunpack.c.l.b16 %v44
    %v65 = vunpack.c.l.b16 %v45
    %v66 = vunpack.c.l.b16 %v46
    %v67 = vunpack.c.l.b16 %v47
    %v68 = vpack.c.b16 %v65, %v64
    %v69 = vpack.c.b16 %v67, %v66
    %v82 = vunpack.c.l.b16 %v48
    %v83 = vunpack.c.h.b16 %v48
    %v84 = vunpack.c.l.b16 %v49
    %v85 = vunpack.c.h.b16 %v49
    %v86 = vunpack.c.l.b16 %v50
    %v87 = vunpack.c.h.b16 %v50
    %v88 = vunpack.c.l.b16 %v51
    %v89 = vunpack.c.h.b16 %v51
    %v90 = vunpack.c.l.b16 %v52
    %v91 = vunpack.c.h.b16 %v52
    %v92 = vunpack.c.l.b16 %v53
    %v93 = vunpack.c.h.b16 %v53
    %v94 = vunpack.c.l.b16 %v54
    %v95 = vunpack.c.h.b16 %v54
    %v96 = vunpack.c.l.b16 %v55
    %v97 = vunpack.c.h.b16 %v55
    %v98 = vunpack.c.l.b16 %v56
    %v99 = vunpack.c.h.b16 %v56
    %v100 = vunpack.c.l.b16 %v57
    %v101 = vunpack.c.h.b16 %v57
    %v102 = vunpack.c.l.b16 %v58
    %v103 = vunpack.c.h.b16 %v58
    %v104 = vunpack.c.l.b16 %v59
    %v105 = vunpack.c.h.b16 %v59
    %v106 = vpack.c.b16 %v84, %v82
    %v107 = vpack.c.b16 %v85, %v83
    %v108 = vpack.c.b16 %v88, %v86
    %v109 = vpack.c.b16 %v89, %v87
    %v110 = vpack.c.b16 %v92, %v90
    %v111 = vpack.c.b16 %v93, %v91
    %v112 = vpack.c.b16 %v96, %v94
    %v113 = vpack.c.b16 %v97, %v95
    %v114 = vpack.c.b16 %v100, %v98
    %v115 = vpack.c.b16 %v101, %v99
    %v116 = vpack.c.b16 %v104, %v102
    %v117 = vpack.c.b16 %v105, %v103
    %vm130 = vcmask 785408
    %v132 = vsel %vm130, %v68, 0
    %v135 = vsel %vm130, %v69, 0
    %137 = vmatprep.subr.bf16.mxu0 %v107
    %138 = vmatpush1.bf16.msra.mxu0 %v106
    %139 = vmatprep.subr.bf16.mxu0 %v109
    %140 = vmatpush1.bf16.msra.mxu0 %v108
    %141 = vmatprep.subr.bf16.mxu0 %v111
    %142 = vmatpush1.bf16.msra.mxu0 %v110
    %143 = vmatprep.subr.bf16.mxu0 %v113
    %144 = vmatpush1.bf16.msra.mxu0 %v112
    %145 = vmatprep.subr.bf16.mxu0 %v115
    %146 = vmatpush1.bf16.msra.mxu0 %v114
    %147 = vmatprep.subr.bf16.mxu0 %v117
    %148 = vmatpush1.bf16.msra.mxu0 %v116
    %149 = vmatprep.subr.bf16.mxu0 0
    %150 = vmatpush1.bf16.msra.mxu0 0
    %151 = vmatprep.subr.bf16.mxu0 0
    %152 = vmatpush1.bf16.msra.mxu0 0
    %153 = vmatprep.subr.bf16.mxu0 0
    %154 = vmatpush1.bf16.msra.mxu0 0
    %155 = vmatprep.subr.bf16.mxu0 0
    %156 = vmatpush1.bf16.msra.mxu0 0
    %157 = vmatprep.subr.bf16.mxu0 0
    %158 = vmatpush1.bf16.msra.mxu0 0
    %159 = vmatprep.subr.bf16.mxu0 0
    %160 = vmatpush1.bf16.msra.mxu0 0
    %161 = vmatprep.subr.bf16.mxu0 0
    %162 = vmatpush1.bf16.msra.mxu0 0
    %163 = vmatprep.subr.bf16.mxu0 0
    %164 = vmatpush1.bf16.msra.mxu0 0
    %165 = vmatprep.subr.bf16.mxu0 0
    %166 = vmatpush1.bf16.msra.mxu0 0
    %167 = vmatprep.subr.bf16.mxu0 0
    %168 = vmatpush1.bf16.msra.mxu0 0
    %169 = vmatprep.mubr.bf16.mxu0 0
    %170 = vmatmul.mubr.bf16.gmra.mrb[0].mxu0 %v132
    %v171 = vpop.f32.mrb[0].mxu0
    %v172 = vadd.f32 0.0, %v171
    %v173 = vpop.f32.mrb[0].mxu0
    %v174 = vadd.f32 0.0, %v173
    %v175 = vpop.f32.mrb[0].mxu0
    %v176 = vadd.f32 0.0, %v175
    %v177 = vpop.f32.mrb[0].mxu0
    %v178 = vadd.f32 0.0, %v177
    %179 = vmatprep.mubr.bf16.mxu0 0
    %180 = vmatmul.mubr.bf16.gmra.mrb[0].mxu0 %v135
    %v181 = vpop.f32.mrb[0].mxu0
    %v182 = vadd.f32 0.0, %v181
    %v183 = vpop.f32.mrb[0].mxu0
    %v184 = vadd.f32 0.0, %v183
    %v185 = vpop.f32.mrb[0].mxu0
    %v186 = vadd.f32 0.0, %v185
    %v187 = vpop.f32.mrb[0].mxu0
    %v188 = vadd.f32 0.0, %v187
    %189 = vdwg.mxu0
    %v190 = vld [vmem:[#allocation2] sm:$0xff]
    %v191 = vld [vmem:[#allocation2 + $0x8] sm:$0xff]
    %v192 = vld [vmem:[#allocation2 + $0x10] sm:$0xff]
    %v193 = vld [vmem:[#allocation2 + $0x18] sm:$0xff]
    %v194 = vld [vmem:[#allocation2 + $0x20] sm:$0xff]
    %v195 = vld [vmem:[#allocation2 + $0x28] sm:$0xff]
    %v196 = vld [vmem:[#allocation2 + $0x30] sm:$0xff]
    %v197 = vld [vmem:[#allocation2 + $0x38] sm:$0xff]
    %v198 = vld [vmem:[#allocation2 + $0x40] sm:$0xff]
    %v199 = vld [vmem:[#allocation2 + $0x48] sm:$0xff]
    %v200 = vld [vmem:[#allocation2 + $0x50] sm:$0xff]
    %v201 = vld [vmem:[#allocation2 + $0x58] sm:$0xff]
    %v214 = vunpack.c.l.b16 %v190
    %v215 = vunpack.c.h.b16 %v190
    %v216 = vunpack.c.l.b16 %v191
    %v217 = vunpack.c.h.b16 %v191
    %v218 = vunpack.c.l.b16 %v192
    %v219 = vunpack.c.h.b16 %v192
    %v220 = vunpack.c.l.b16 %v193
    %v221 = vunpack.c.h.b16 %v193
    %v222 = vunpack.c.l.b16 %v194
    %v223 = vunpack.c.h.b16 %v194
    %v224 = vunpack.c.l.b16 %v195
    %v225 = vunpack.c.h.b16 %v195
    %v226 = vunpack.c.l.b16 %v196
    %v227 = vunpack.c.h.b16 %v196
    %v228 = vunpack.c.l.b16 %v197
    %v229 = vunpack.c.h.b16 %v197
    %v230 = vunpack.c.l.b16 %v198
    %v231 = vunpack.c.h.b16 %v198
    %v232 = vunpack.c.l.b16 %v199
    %v233 = vunpack.c.h.b16 %v199
    %v234 = vunpack.c.l.b16 %v200
    %v235 = vunpack.c.h.b16 %v200
    %v236 = vunpack.c.l.b16 %v201
    %v237 = vunpack.c.h.b16 %v201
    %v238 = vpack.c.b16 %v216, %v214
    %v239 = vpack.c.b16 %v217, %v215
    %v240 = vpack.c.b16 %v220, %v218
    %v241 = vpack.c.b16 %v221, %v219
    %v242 = vpack.c.b16 %v224, %v222
    %v243 = vpack.c.b16 %v225, %v223
    %v244 = vpack.c.b16 %v228, %v226
    %v245 = vpack.c.b16 %v229, %v227
    %v246 = vpack.c.b16 %v232, %v230
    %v247 = vpack.c.b16 %v233, %v231
    %v248 = vpack.c.b16 %v236, %v234
    %v249 = vpack.c.b16 %v237, %v235
    %262 = vmatprep.subr.bf16.mxu0 %v239
    %263 = vmatpush1.bf16.msra.mxu0 %v238
    %264 = vmatprep.subr.bf16.mxu0 %v241
    %265 = vmatpush1.bf16.msra.mxu0 %v240
    %266 = vmatprep.subr.bf16.mxu0 %v243
    %267 = vmatpush1.bf16.msra.mxu0 %v242
    %268 = vmatprep.subr.bf16.mxu0 %v245
    %269 = vmatpush1.bf16.msra.mxu0 %v244
    %270 = vmatprep.subr.bf16.mxu0 %v247
    %271 = vmatpush1.bf16.msra.mxu0 %v246
    %272 = vmatprep.subr.bf16.mxu0 %v249
    %273 = vmatpush1.bf16.msra.mxu0 %v248
    %274 = vmatprep.subr.bf16.mxu0 0
    %275 = vmatpush1.bf16.msra.mxu0 0
    %276 = vmatprep.subr.bf16.mxu0 0
    %277 = vmatpush1.bf16.msra.mxu0 0
    %278 = vmatprep.subr.bf16.mxu0 0
    %279 = vmatpush1.bf16.msra.mxu0 0
    %280 = vmatprep.subr.bf16.mxu0 0
    %281 = vmatpush1.bf16.msra.mxu0 0
    %282 = vmatprep.subr.bf16.mxu0 0
    %283 = vmatpush1.bf16.msra.mxu0 0
    %284 = vmatprep.subr.bf16.mxu0 0
    %285 = vmatpush1.bf16.msra.mxu0 0
    %286 = vmatprep.subr.bf16.mxu0 0
    %287 = vmatpush1.bf16.msra.mxu0 0
    %288 = vmatprep.subr.bf16.mxu0 0
    %289 = vmatpush1.bf16.msra.mxu0 0
    %290 = vmatprep.subr.bf16.mxu0 0
    %291 = vmatpush1.bf16.msra.mxu0 0
    %292 = vmatprep.subr.bf16.mxu0 0
    %293 = vmatpush1.bf16.msra.mxu0 0
    %294 = vmatprep.mubr.bf16.mxu0 0
    %295 = vmatmul.mubr.bf16.gmra.mrb[0].mxu0 %v132
    %v296 = vpop.f32.mrb[0].mxu0
    %v297 = vadd.f32 0.0, %v296
    %v298 = vpop.f32.mrb[0].mxu0
    %v299 = vadd.f32 0.0, %v298
    %v300 = vpop.f32.mrb[0].mxu0
    %v301 = vadd.f32 0.0, %v300
    %v302 = vpop.f32.mrb[0].mxu0
    %v303 = vadd.f32 0.0, %v302
    %304 = vmatprep.mubr.bf16.mxu0 0
    %305 = vmatmul.mubr.bf16.gmra.mrb[0].mxu0 %v135
    %v306 = vpop.f32.mrb[0].mxu0
    %v307 = vadd.f32 0.0, %v306
    %v308 = vpop.f32.mrb[0].mxu0
    %v309 = vadd.f32 0.0, %v308
    %v310 = vpop.f32.mrb[0].mxu0
    %v311 = vadd.f32 0.0, %v310
    %v312 = vpop.f32.mrb[0].mxu0
    %v313 = vadd.f32 0.0, %v312
    %314 = vdwg.mxu0
    %v315 = vlaneseq
    %v316 = vshrl.u32 %v315, 7
    %v317 = vadd.s32 %v316, 8
    %v318 = vadd.s32 %v316, 16
    %v319 = vadd.s32 %v316, 24
    %vm320 = vcmp.lt.s32.totalorder %v316, 0
    %v321 = vsub.s32 0, %v316
    %v322 = vsel %vm320, %v321, %v316
    %v323 = vshrl.u32 %v322, 4
    %v324 = vand.u32 %v322, 15
    %v325 = vsub.s32 0, %v324
    %v326 = vsel %vm320, %v325, %v324
    %vm327 = vcmp.lt.s32.totalorder %v317, 0
    %v328 = vsub.s32 0, %v317
    %v329 = vsel %vm327, %v328, %v317
    %v330 = vshrl.u32 %v329, 4
    %v331 = vand.u32 %v329, 15
    %v332 = vsub.s32 0, %v331
    %v333 = vsel %vm327, %v332, %v331
    %vm334 = vcmp.lt.s32.totalorder %v318, 0
    %v335 = vsub.s32 0, %v318
    %v336 = vsel %vm334, %v335, %v318
    %v337 = vshrl.u32 %v336, 4
    %v338 = vand.u32 %v336, 15
    %v339 = vsub.s32 0, %v338
    %v340 = vsel %vm334, %v339, %v338
    %vm341 = vcmp.lt.s32.totalorder %v319, 0
    %v342 = vsub.s32 0, %v319
    %v343 = vsel %vm341, %v342, %v319
    %v344 = vshrl.u32 %v343, 4
    %v345 = vand.u32 %v343, 15
    %v346 = vsub.s32 0, %v345
    %v347 = vsel %vm341, %v346, %v345
    %vm348 = vcmp.ne.s32.totalorder %v326, 0
    %vm349 = vcmp.ne.s32.totalorder %v333, 0
    %vm350 = vcmp.ne.s32.totalorder %v340, 0
    %vm351 = vcmp.ne.s32.totalorder %v347, 0
    %vm352 = vcmp.lt.s32.totalorder %v326, 0
    %vm353 = vcmp.lt.s32.totalorder %v333, 0
    %vm354 = vcmp.lt.s32.totalorder %v340, 0
    %vm355 = vcmp.lt.s32.totalorder %v347, 0
    %vm356 = vmand %vm352, %vm348
    %vm357 = vmand %vm353, %vm349
    %vm358 = vmand %vm354, %vm350
    %vm359 = vmand %vm355, %vm351
    %v360 = vadd.s32 %v326, 16
    %v361 = vadd.s32 %v333, 16
    %v362 = vadd.s32 %v340, 16
    %v363 = vadd.s32 %v347, 16
    %v364 = vsel %vm356, %v360, %v326
    %v365 = vsel %vm357, %v361, %v333
    %v366 = vsel %vm358, %v362, %v340
    %v367 = vsel %vm359, %v363, %v347
    %vm368 = vcmp.eq.s32.totalorder %v364, 0
    %vm369 = vcmp.eq.s32.totalorder %v365, 0
    %vm370 = vcmp.eq.s32.totalorder %v366, 0
    %vm371 = vcmp.eq.s32.totalorder %v367, 0
    %v372 = vrot.slane %v172, 7
    %v373 = vrot.slane %v174, 7
    %v374 = vrot.slane %v176, 7
    %v375 = vrot.slane %v178, 7
    %v376 = vrot.slane %v182, 7
    %v377 = vrot.slane %v184, 7
    %v378 = vrot.slane %v186, 7
    %v379 = vrot.slane %v188, 7
    %vm380 = vcmp.lt.s32.totalorder %v316, 1
    %v381 = vsel %vm380, %v376, %v378
    %v382 = vsel %vm380, %v377, %v379
    %v383 = vsel %vm380, %v374, %v376
    %v384 = vsel %vm380, %v375, %v377
    %v385 = vsel %vm380, %v372, %v374
    %v386 = vsel %vm380, %v373, %v375
    %v387 = vsel %vm380, %v378, %v372
    %v388 = vsel %vm380, %v379, %v373
    %v389 = vsel %vm368, 0.0, %v387
    %v390 = vsel %vm368, 0.0, %v388
    %v391 = vsel %vm369, 0.0, %v385
    %v392 = vsel %vm369, 0.0, %v386
    %v393 = vsel %vm370, 0.0, %v383
    %v394 = vsel %vm370, 0.0, %v384
    %v395 = vsel %vm371, 0.0, %v381
    %v396 = vsel %vm371, 0.0, %v382
    %vm397 = vcmp.eq.s32.totalorder %v364, 15
    %vm398 = vcmp.eq.s32.totalorder %v365, 15
    %vm399 = vcmp.eq.s32.totalorder %v366, 15
    %vm400 = vcmp.eq.s32.totalorder %v367, 15
    %v401 = vrot.slane %v297, 1
    %v402 = vrot.slane %v299, 1
    %v403 = vrot.slane %v301, 1
    %v404 = vrot.slane %v303, 1
    %v405 = vrot.slane %v307, 1
    %v406 = vrot.slane %v309, 1
    %v407 = vrot.slane %v311, 1
    %v408 = vrot.slane %v313, 1
    %vm409 = vcmp.lt.s32.totalorder %v316, 7
    %v410 = vsel %vm409, %v405, %v407
    %v411 = vsel %vm409, %v406, %v408
    %v412 = vsel %vm409, %v403, %v405
    %v413 = vsel %vm409, %v404, %v406
    %v414 = vsel %vm409, %v401, %v403
    %v415 = vsel %vm409, %v402, %v404
    %v416 = vsel %vm409, %v407, %v401
    %v417 = vsel %vm409, %v408, %v402
    %v418 = vsel %vm397, 0.0, %v414
    %v419 = vsel %vm397, 0.0, %v415
    %v420 = vsel %vm398, 0.0, %v412
    %v421 = vsel %vm398, 0.0, %v413
    %v422 = vsel %vm399, 0.0, %v410
    %v423 = vsel %vm399, 0.0, %v411
    %v424 = vsel %vm400, 0.0, %v416
    %v425 = vsel %vm400, 0.0, %v417
    %v426 = vld [vmem:[%s6] sm:$0x3]
    %v427 = vadd.f32 %v389, %v297
    %v428 = vadd.f32 %v390, %v299
    %v429 = vadd.f32 %v391, %v301
    %v430 = vadd.f32 %v392, %v303
    %v431 = vadd.f32 %v393, %v307
    %v432 = vadd.f32 %v394, %v309
    %v433 = vadd.f32 %v395, %v311
    %v434 = vadd.f32 %v396, %v313
    %v436 = vlaneseq
    %v437 = vshrl.u32 %v436, 7
    %v438 = vsub.s32 0, %v437
    %v439 = vrot.slane %v426, %v438
    %v440 = vlaneseq
    %v441 = vshrl.u32 %v440, 7
    %v442 = vsub.s32 1, %v441
    %v443 = vrot.slane %v426, %v442
    %v446 = vadd.f32 %v427, %v439
    %v447 = vadd.f32 %v428, %v443
    %v448 = vadd.f32 %v429, %v439
    %v449 = vadd.f32 %v430, %v443
    %v450 = vadd.f32 %v431, %v439
    %v451 = vadd.f32 %v432, %v443
    %v452 = vadd.f32 %v433, %v439
    %v453 = vadd.f32 %v434, %v443
    %vm454 = vcmp.gt.f32.partialorder %v446, 0.0
    %vm455 = vcmp.gt.f32.partialorder %v447, 0.0
    %vm456 = vcmp.gt.f32.partialorder %v448, 0.0
    %vm457 = vcmp.gt.f32.partialorder %v449, 0.0
    %vm458 = vcmp.gt.f32.partialorder %v450, 0.0
    %vm459 = vcmp.gt.f32.partialorder %v451, 0.0
    %vm460 = vcmp.gt.f32.partialorder %v452, 0.0
    %vm461 = vcmp.gt.f32.partialorder %v453, 0.0
    %v462 = vmul.f32 %v446, 1.442695
    %v463 = vpow.pop %v462
    %v464 = vmul.f32 %v447, 1.442695
    %v465 = vpow.pop %v464
    %v466 = vmul.f32 %v448, 1.442695
    %v467 = vpow.pop %v466
    %v468 = vmul.f32 %v449, 1.442695
    %v469 = vpow.pop %v468
    %v470 = vmul.f32 %v450, 1.442695
    %v471 = vpow.pop %v470
    %v472 = vmul.f32 %v451, 1.442695
    %v473 = vpow.pop %v472
    %v474 = vmul.f32 %v452, 1.442695
    %v475 = vpow.pop %v474
    %v476 = vmul.f32 %v453, 1.442695
    %v477 = vpow.pop %v476
    %v478 = vsub.f32 %v463, 1.0
    %v479 = vsub.f32 %v465, 1.0
    %v480 = vsub.f32 %v467, 1.0
    %v481 = vsub.f32 %v469, 1.0
    %v482 = vsub.f32 %v471, 1.0
    %v483 = vsub.f32 %v473, 1.0
    %v484 = vsub.f32 %v475, 1.0
    %v485 = vsub.f32 %v477, 1.0
    %v486 = vmul.f32 %v478, 1.6732632
    %v487 = vmul.f32 %v479, 1.6732632
    %v488 = vmul.f32 %v480, 1.6732632
    %v489 = vmul.f32 %v481, 1.6732632
    %v490 = vmul.f32 %v482, 1.6732632
    %v491 = vmul.f32 %v483, 1.6732632
    %v492 = vmul.f32 %v484, 1.6732632
    %v493 = vmul.f32 %v485, 1.6732632
    %v494 = vsel %vm454, %v446, %v486
    %v495 = vsel %vm455, %v447, %v487
    %v496 = vsel %vm456, %v448, %v488
    %v497 = vsel %vm457, %v449, %v489
    %v498 = vsel %vm458, %v450, %v490
    %v499 = vsel %vm459, %v451, %v491
    %v500 = vsel %vm460, %v452, %v492
    %v501 = vsel %vm461, %v453, %v493
    %v502 = vmul.f32 %v494, 1.050701
    %v503 = vmul.f32 %v495, 1.050701
    %v504 = vmul.f32 %v496, 1.050701
    %v505 = vmul.f32 %v497, 1.050701
    %v506 = vmul.f32 %v498, 1.050701
    %v507 = vmul.f32 %v499, 1.050701
    %v508 = vmul.f32 %v500, 1.050701
    %v509 = vmul.f32 %v501, 1.050701
    %v510 = vpack.c.bf16 %v504, %v502
    %v511 = vpack.c.bf16 %v505, %v503
    %v512 = vpack.c.bf16 %v508, %v506
    %v513 = vpack.c.bf16 %v509, %v507
    %v514 = vadd.f32 %v172, %v418
    %v515 = vadd.f32 %v174, %v419
    %v516 = vadd.f32 %v176, %v420
    %v517 = vadd.f32 %v178, %v421
    %v518 = vadd.f32 %v182, %v422
    %v519 = vadd.f32 %v184, %v423
    %v520 = vadd.f32 %v186, %v424
    %v521 = vadd.f32 %v188, %v425
    %v522 = vadd.f32 %v514, %v439
    %v523 = vadd.f32 %v515, %v443
    %v524 = vadd.f32 %v516, %v439
    %v525 = vadd.f32 %v517, %v443
    %v526 = vadd.f32 %v518, %v439
    %v527 = vadd.f32 %v519, %v443
    %v528 = vadd.f32 %v520, %v439
    %v529 = vadd.f32 %v521, %v443
    %vm530 = vcmp.gt.f32.partialorder %v522, 0.0
    %vm531 = vcmp.gt.f32.partialorder %v523, 0.0
    %vm532 = vcmp.gt.f32.partialorder %v524, 0.0
    %vm533 = vcmp.gt.f32.partialorder %v525, 0.0
    %vm534 = vcmp.gt.f32.partialorder %v526, 0.0
    %vm535 = vcmp.gt.f32.partialorder %v527, 0.0
    %vm536 = vcmp.gt.f32.partialorder %v528, 0.0
    %vm537 = vcmp.gt.f32.partialorder %v529, 0.0
    %v538 = vmul.f32 %v522, 1.442695
    %v539 = vpow.pop %v538
    %v540 = vmul.f32 %v523, 1.442695
    %v541 = vpow.pop %v540
    %v542 = vmul.f32 %v524, 1.442695
    %v543 = vpow.pop %v542
    %v544 = vmul.f32 %v525, 1.442695
    %v545 = vpow.pop %v544
    %v546 = vmul.f32 %v526, 1.442695
    %v547 = vpow.pop %v546
    %v548 = vmul.f32 %v527, 1.442695
    %v549 = vpow.pop %v548
    %v550 = vmul.f32 %v528, 1.442695
    %v551 = vpow.pop %v550
    %v552 = vmul.f32 %v529, 1.442695
    %v553 = vpow.pop %v552
    %v554 = vsub.f32 %v539, 1.0
    %v555 = vsub.f32 %v541, 1.0
    %v556 = vsub.f32 %v543, 1.0
    %v557 = vsub.f32 %v545, 1.0
    %v558 = vsub.f32 %v547, 1.0
    %v559 = vsub.f32 %v549, 1.0
    %v560 = vsub.f32 %v551, 1.0
    %v561 = vsub.f32 %v553, 1.0
    %v562 = vmul.f32 %v554, 1.6732632
    %v563 = vmul.f32 %v555, 1.6732632
    %v564 = vmul.f32 %v556, 1.6732632
    %v565 = vmul.f32 %v557, 1.6732632
    %v566 = vmul.f32 %v558, 1.6732632
    %v567 = vmul.f32 %v559, 1.6732632
    %v568 = vmul.f32 %v560, 1.6732632
    %v569 = vmul.f32 %v561, 1.6732632
    %v570 = vsel %vm530, %v522, %v562
    %v571 = vsel %vm531, %v523, %v563
    %v572 = vsel %vm532, %v524, %v564
    %v573 = vsel %vm533, %v525, %v565
    %v574 = vsel %vm534, %v526, %v566
    %v575 = vsel %vm535, %v527, %v567
    %v576 = vsel %vm536, %v528, %v568
    %v577 = vsel %vm537, %v529, %v569
    %v578 = vmul.f32 %v570, 1.050701
    %v579 = vmul.f32 %v571, 1.050701
    %v580 = vmul.f32 %v572, 1.050701
    %v581 = vmul.f32 %v573, 1.050701
    %v582 = vmul.f32 %v574, 1.050701
    %v583 = vmul.f32 %v575, 1.050701
    %v584 = vmul.f32 %v576, 1.050701
    %v585 = vmul.f32 %v577, 1.050701
    %v586 = vpack.c.bf16 %v580, %v578
    %v587 = vpack.c.bf16 %v581, %v579
    %v588 = vpack.c.bf16 %v584, %v582
    %v589 = vpack.c.bf16 %v585, %v583
    %v590 = vld [vmem:[%s3] sm:$0xff]
    %v591 = vld [vmem:[%s3 + $0x8] sm:$0xff]
    %v592 = vld [vmem:[%s3 + $0x10] sm:$0xff]
    %v593 = vld [vmem:[%s3 + $0x18] sm:$0xff]
    %v594 = vld [vmem:[%s3 + $0x20] sm:$0xff]
    %v595 = vld [vmem:[%s3 + $0x28] sm:$0xff]
    %v596 = vld [vmem:[%s3 + $0x30] sm:$0xff]
    %v597 = vld [vmem:[%s3 + $0x38] sm:$0xff]
    %v598 = vld [vmem:[%s3 + $0x40] sm:$0xff]
    %v599 = vld [vmem:[%s3 + $0x48] sm:$0xff]
    %v600 = vld [vmem:[%s3 + $0x50] sm:$0xff]
    %v601 = vld [vmem:[%s3 + $0x58] sm:$0xff]
    %v602 = vld [vmem:[%s3 + $0x60] sm:$0xff]
    %v603 = vld [vmem:[%s3 + $0x68] sm:$0xff]
    %v604 = vld [vmem:[%s3 + $0x70] sm:$0xff]
    %v605 = vld [vmem:[%s3 + $0x78] sm:$0xff]
    %v606 = vld [vmem:[%s3 + $0x80] sm:$0xff]
    %v607 = vld [vmem:[%s3 + $0x88] sm:$0xff]
    %v608 = vld [vmem:[%s3 + $0x90] sm:$0xff]
    %v609 = vld [vmem:[%s3 + $0x98] sm:$0xff]
    %v610 = vld [vmem:[%s3 + $0xa0] sm:$0xff]
    %v611 = vld [vmem:[%s3 + $0xa8] sm:$0xff]
    %v612 = vld [vmem:[%s3 + $0xb0] sm:$0xff]
    %v613 = vld [vmem:[%s3 + $0xb8] sm:$0xff]
    %v614 = vld [vmem:[%s4] sm:$0xff]
    %v615 = vld [vmem:[%s4 + $0x8] sm:$0xff]
    %v616 = vld [vmem:[%s4 + $0x10] sm:$0xff]
    %v617 = vld [vmem:[%s4 + $0x18] sm:$0xff]
    %v618 = vld [vmem:[%s4 + $0x20] sm:$0xff]
    %v619 = vld [vmem:[%s4 + $0x28] sm:$0xff]
    %v620 = vld [vmem:[%s4 + $0x30] sm:$0xff]
    %v621 = vld [vmem:[%s4 + $0x38] sm:$0xff]
    %v622 = vld [vmem:[%s4 + $0x40] sm:$0xff]
    %v623 = vld [vmem:[%s4 + $0x48] sm:$0xff]
    %v624 = vld [vmem:[%s4 + $0x50] sm:$0xff]
    %v625 = vld [vmem:[%s4 + $0x58] sm:$0xff]
    %v626 = vld [vmem:[%s4 + $0x60] sm:$0xff]
    %v627 = vld [vmem:[%s4 + $0x68] sm:$0xff]
    %v628 = vld [vmem:[%s4 + $0x70] sm:$0xff]
    %v629 = vld [vmem:[%s4 + $0x78] sm:$0xff]
    %v630 = vld [vmem:[%s4 + $0x80] sm:$0xff]
    %v631 = vld [vmem:[%s4 + $0x88] sm:$0xff]
    %v632 = vld [vmem:[%s4 + $0x90] sm:$0xff]
    %v633 = vld [vmem:[%s4 + $0x98] sm:$0xff]
    %v634 = vld [vmem:[%s4 + $0xa0] sm:$0xff]
    %v635 = vld [vmem:[%s4 + $0xa8] sm:$0xff]
    %v636 = vld [vmem:[%s4 + $0xb0] sm:$0xff]
    %v637 = vld [vmem:[%s4 + $0xb8] sm:$0xff]
    %v662 = vunpack.c.l.b16 %v614
    %v663 = vunpack.c.h.b16 %v614
    %v664 = vunpack.c.l.b16 %v615
    %v665 = vunpack.c.h.b16 %v615
    %v666 = vunpack.c.l.b16 %v616
    %v667 = vunpack.c.h.b16 %v616
    %v668 = vunpack.c.l.b16 %v617
    %v669 = vunpack.c.h.b16 %v617
    %v670 = vunpack.c.l.b16 %v618
    %v671 = vunpack.c.h.b16 %v618
    %v672 = vunpack.c.l.b16 %v619
    %v673 = vunpack.c.h.b16 %v619
    %v674 = vunpack.c.l.b16 %v620
    %v675 = vunpack.c.h.b16 %v620
    %v676 = vunpack.c.l.b16 %v621
    %v677 = vunpack.c.h.b16 %v621
    %v678 = vunpack.c.l.b16 %v622
    %v679 = vunpack.c.h.b16 %v622
    %v680 = vunpack.c.l.b16 %v623
    %v681 = vunpack.c.h.b16 %v623
    %v682 = vunpack.c.l.b16 %v624
    %v683 = vunpack.c.h.b16 %v624
    %v684 = vunpack.c.l.b16 %v625
    %v685 = vunpack.c.h.b16 %v625
    %v686 = vunpack.c.l.b16 %v626
    %v687 = vunpack.c.h.b16 %v626
    %v688 = vunpack.c.l.b16 %v627
    %v689 = vunpack.c.h.b16 %v627
    %v690 = vunpack.c.l.b16 %v628
    %v691 = vunpack.c.h.b16 %v628
    %v692 = vunpack.c.l.b16 %v629
    %v693 = vunpack.c.h.b16 %v629
    %v694 = vunpack.c.l.b16 %v630
    %v695 = vunpack.c.h.b16 %v630
    %v696 = vunpack.c.l.b16 %v631
    %v697 = vunpack.c.h.b16 %v631
    %v698 = vunpack.c.l.b16 %v632
    %v699 = vunpack.c.h.b16 %v632
    %v700 = vunpack.c.l.b16 %v633
    %v701 = vunpack.c.h.b16 %v633
    %v702 = vunpack.c.l.b16 %v634
    %v703 = vunpack.c.h.b16 %v634
    %v704 = vunpack.c.l.b16 %v635
    %v705 = vunpack.c.h.b16 %v635
    %v706 = vunpack.c.l.b16 %v636
    %v707 = vunpack.c.h.b16 %v636
    %v708 = vunpack.c.l.b16 %v637
    %v709 = vunpack.c.h.b16 %v637
    %v710 = vpack.c.b16 %v664, %v662
    %v711 = vpack.c.b16 %v665, %v663
    %v712 = vpack.c.b16 %v668, %v666
    %v713 = vpack.c.b16 %v669, %v667
    %v714 = vpack.c.b16 %v672, %v670
    %v715 = vpack.c.b16 %v673, %v671
    %v716 = vpack.c.b16 %v676, %v674
    %v717 = vpack.c.b16 %v677, %v675
    %v718 = vpack.c.b16 %v680, %v678
    %v719 = vpack.c.b16 %v681, %v679
    %v720 = vpack.c.b16 %v684, %v682
    %v721 = vpack.c.b16 %v685, %v683
    %v722 = vpack.c.b16 %v688, %v686
    %v723 = vpack.c.b16 %v689, %v687
    %v724 = vpack.c.b16 %v692, %v690
    %v725 = vpack.c.b16 %v693, %v691
    %v726 = vpack.c.b16 %v696, %v694
    %v727 = vpack.c.b16 %v697, %v695
    %v728 = vpack.c.b16 %v700, %v698
    %v729 = vpack.c.b16 %v701, %v699
    %v730 = vpack.c.b16 %v704, %v702
    %v731 = vpack.c.b16 %v705, %v703
    %v732 = vpack.c.b16 %v708, %v706
    %v733 = vpack.c.b16 %v709, %v707
    %vm758 = vcmask 523264
    %v760 = vsel %vm758, %v587, 0
    %v763 = vsel %vm758, %v589, 0
    %765 = vmatprep.subr.bf16.mxu0 %v711
    %766 = vmatpush1.bf16.msra.mxu0 %v710
    %767 = vmatprep.subr.bf16.mxu0 %v713
    %768 = vmatpush1.bf16.msra.mxu0 %v712
    %769 = vmatprep.subr.bf16.mxu0 %v715
    %770 = vmatpush1.bf16.msra.mxu0 %v714
    %771 = vmatprep.subr.bf16.mxu0 %v717
    %772 = vmatpush1.bf16.msra.mxu0 %v716
    %773 = vmatprep.subr.bf16.mxu0 %v719
    %774 = vmatpush1.bf16.msra.mxu0 %v718
    %775 = vmatprep.subr.bf16.mxu0 %v721
    %776 = vmatpush1.bf16.msra.mxu0 %v720
    %777 = vmatprep.subr.bf16.mxu0 %v723
    %778 = vmatpush1.bf16.msra.mxu0 %v722
    %779 = vmatprep.subr.bf16.mxu0 %v725
    %780 = vmatpush1.bf16.msra.mxu0 %v724
    %781 = vmatprep.subr.bf16.mxu0 %v727
    %782 = vmatpush1.bf16.msra.mxu0 %v726
    %783 = vmatprep.subr.bf16.mxu0 %v729
    %784 = vmatpush1.bf16.msra.mxu0 %v728
    %785 = vmatprep.subr.bf16.mxu0 %v731
    %786 = vmatpush1.bf16.msra.mxu0 %v730
    %787 = vmatprep.subr.bf16.mxu0 %v733
    %788 = vmatpush1.bf16.msra.mxu0 %v732
    %789 = vmatprep.subr.bf16.mxu0 0
    %790 = vmatpush1.bf16.msra.mxu0 0
    %791 = vmatprep.subr.bf16.mxu0 0
    %792 = vmatpush1.bf16.msra.mxu0 0
    %793 = vmatprep.subr.bf16.mxu0 0
    %794 = vmatpush1.bf16.msra.mxu0 0
    %795 = vmatprep.subr.bf16.mxu0 0
    %796 = vmatpush1.bf16.msra.mxu0 0
    %797 = vmatprep.mubr.bf16.mxu0 %v760
    %798 = vmatmul.mubr.bf16.gmra.mrb[0].mxu0 %v586
    %v799 = vpop.f32.mrb[0].mxu0
    %v800 = vadd.f32 0.0, %v799
    %v801 = vpop.f32.mrb[0].mxu0
    %v802 = vadd.f32 0.0, %v801
    %v803 = vpop.f32.mrb[0].mxu0
    %v804 = vadd.f32 0.0, %v803
    %v805 = vpop.f32.mrb[0].mxu0
    %v806 = vadd.f32 0.0, %v805
    %807 = vmatprep.mubr.bf16.mxu0 %v763
    %808 = vmatmul.mubr.bf16.gmra.mrb[0].mxu0 %v588
    %v809 = vpop.f32.mrb[0].mxu0
    %v810 = vadd.f32 0.0, %v809
    %v811 = vpop.f32.mrb[0].mxu0
    %v812 = vadd.f32 0.0, %v811
    %v813 = vpop.f32.mrb[0].mxu0
    %v814 = vadd.f32 0.0, %v813
    %v815 = vpop.f32.mrb[0].mxu0
    %v816 = vadd.f32 0.0, %v815
    %817 = vdwg.mxu0
    %v842 = vunpack.c.l.b16 %v590
    %v843 = vunpack.c.h.b16 %v590
    %v844 = vunpack.c.l.b16 %v591
    %v845 = vunpack.c.h.b16 %v591
    %v846 = vunpack.c.l.b16 %v592
    %v847 = vunpack.c.h.b16 %v592
    %v848 = vunpack.c.l.b16 %v593
    %v849 = vunpack.c.h.b16 %v593
    %v850 = vunpack.c.l.b16 %v594
    %v851 = vunpack.c.h.b16 %v594
    %v852 = vunpack.c.l.b16 %v595
    %v853 = vunpack.c.h.b16 %v595
    %v854 = vunpack.c.l.b16 %v596
    %v855 = vunpack.c.h.b16 %v596
    %v856 = vunpack.c.l.b16 %v597
    %v857 = vunpack.c.h.b16 %v597
    %v858 = vunpack.c.l.b16 %v598
    %v859 = vunpack.c.h.b16 %v598
    %v860 = vunpack.c.l.b16 %v599
    %v861 = vunpack.c.h.b16 %v599
    %v862 = vunpack.c.l.b16 %v600
    %v863 = vunpack.c.h.b16 %v600
    %v864 = vunpack.c.l.b16 %v601
    %v865 = vunpack.c.h.b16 %v601
    %v866 = vunpack.c.l.b16 %v602
    %v867 = vunpack.c.h.b16 %v602
    %v868 = vunpack.c.l.b16 %v603
    %v869 = vunpack.c.h.b16 %v603
    %v870 = vunpack.c.l.b16 %v604
    %v871 = vunpack.c.h.b16 %v604
    %v872 = vunpack.c.l.b16 %v605
    %v873 = vunpack.c.h.b16 %v605
    %v874 = vunpack.c.l.b16 %v606
    %v875 = vunpack.c.h.b16 %v606
    %v876 = vunpack.c.l.b16 %v607
    %v877 = vunpack.c.h.b16 %v607
    %v878 = vunpack.c.l.b16 %v608
    %v879 = vunpack.c.h.b16 %v608
    %v880 = vunpack.c.l.b16 %v609
    %v881 = vunpack.c.h.b16 %v609
    %v882 = vunpack.c.l.b16 %v610
    %v883 = vunpack.c.h.b16 %v610
    %v884 = vunpack.c.l.b16 %v611
    %v885 = vunpack.c.h.b16 %v611
    %v886 = vunpack.c.l.b16 %v612
    %v887 = vunpack.c.h.b16 %v612
    %v888 = vunpack.c.l.b16 %v613
    %v889 = vunpack.c.h.b16 %v613
    %v890 = vpack.c.b16 %v844, %v842
    %v891 = vpack.c.b16 %v845, %v843
    %v892 = vpack.c.b16 %v848, %v846
    %v893 = vpack.c.b16 %v849, %v847
    %v894 = vpack.c.b16 %v852, %v850
    %v895 = vpack.c.b16 %v853, %v851
    %v896 = vpack.c.b16 %v856, %v854
    %v897 = vpack.c.b16 %v857, %v855
    %v898 = vpack.c.b16 %v860, %v858
    %v899 = vpack.c.b16 %v861, %v859
    %v900 = vpack.c.b16 %v864, %v862
    %v901 = vpack.c.b16 %v865, %v863
    %v902 = vpack.c.b16 %v868, %v866
    %v903 = vpack.c.b16 %v869, %v867
    %v904 = vpack.c.b16 %v872, %v870
    %v905 = vpack.c.b16 %v873, %v871
    %v906 = vpack.c.b16 %v876, %v874
    %v907 = vpack.c.b16 %v877, %v875
    %v908 = vpack.c.b16 %v880, %v878
    %v909 = vpack.c.b16 %v881, %v879
    %v910 = vpack.c.b16 %v884, %v882
    %v911 = vpack.c.b16 %v885, %v883
    %v912 = vpack.c.b16 %v888, %v886
    %v913 = vpack.c.b16 %v889, %v887
    %v939 = vsel %vm758, %v511, 0
    %v942 = vsel %vm758, %v513, 0
    %944 = vmatprep.subr.bf16.mxu0 %v891
    %945 = vmatpush1.bf16.msra.mxu0 %v890
    %946 = vmatprep.subr.bf16.mxu0 %v893
    %947 = vmatpush1.bf16.msra.mxu0 %v892
    %948 = vmatprep.subr.bf16.mxu0 %v895
    %949 = vmatpush1.bf16.msra.mxu0 %v894
    %950 = vmatprep.subr.bf16.mxu0 %v897
    %951 = vmatpush1.bf16.msra.mxu0 %v896
    %952 = vmatprep.subr.bf16.mxu0 %v899
    %953 = vmatpush1.bf16.msra.mxu0 %v898
    %954 = vmatprep.subr.bf16.mxu0 %v901
    %955 = vmatpush1.bf16.msra.mxu0 %v900
    %956 = vmatprep.subr.bf16.mxu0 %v903
    %957 = vmatpush1.bf16.msra.mxu0 %v902
    %958 = vmatprep.subr.bf16.mxu0 %v905
    %959 = vmatpush1.bf16.msra.mxu0 %v904
    %960 = vmatprep.subr.bf16.mxu0 %v907
    %961 = vmatpush1.bf16.msra.mxu0 %v906
    %962 = vmatprep.subr.bf16.mxu0 %v909
    %963 = vmatpush1.bf16.msra.mxu0 %v908
    %964 = vmatprep.subr.bf16.mxu0 %v911
    %965 = vmatpush1.bf16.msra.mxu0 %v910
    %966 = vmatprep.subr.bf16.mxu0 %v913
    %967 = vmatpush1.bf16.msra.mxu0 %v912
    %968 = vmatprep.subr.bf16.mxu0 0
    %969 = vmatpush1.bf16.msra.mxu0 0
    %970 = vmatprep.subr.bf16.mxu0 0
    %971 = vmatpush1.bf16.msra.mxu0 0
    %972 = vmatprep.subr.bf16.mxu0 0
    %973 = vmatpush1.bf16.msra.mxu0 0
    %974 = vmatprep.subr.bf16.mxu0 0
    %975 = vmatpush1.bf16.msra.mxu0 0
    %976 = vmatprep.mubr.bf16.mxu0 %v939
    %977 = vmatmul.mubr.bf16.gmra.mrb[0].mxu0 %v510
    %v978 = vpop.f32.mrb[0].mxu0
    %v979 = vadd.f32 %v800, %v978
    %v980 = vpop.f32.mrb[0].mxu0
    %v981 = vadd.f32 %v802, %v980
    %v982 = vpop.f32.mrb[0].mxu0
    %v983 = vadd.f32 %v804, %v982
    %v984 = vpop.f32.mrb[0].mxu0
    %v985 = vadd.f32 %v806, %v984
    %986 = vmatprep.mubr.bf16.mxu0 %v942
    %987 = vmatmul.mubr.bf16.gmra.mrb[0].mxu0 %v512
    %v988 = vpop.f32.mrb[0].mxu0
    %v989 = vadd.f32 %v810, %v988
    %v990 = vpop.f32.mrb[0].mxu0
    %v991 = vadd.f32 %v812, %v990
    %v992 = vpop.f32.mrb[0].mxu0
    %v993 = vadd.f32 %v814, %v992
    %v994 = vpop.f32.mrb[0].mxu0
    %v995 = vadd.f32 %v816, %v994
    %996 = vdwg.mxu0
    %v997 = vld [vmem:[%s5] sm:$0xff]
    %v998 = vld [vmem:[%s5 + $0x8] sm:$0xff]
    %v999 = vld [vmem:[%s5 + $0x10] sm:$0xff]
    %v1000 = vld [vmem:[%s5 + $0x18] sm:$0xff]
    %v1001 = vld [vmem:[%s5 + $0x20] sm:$0xff]
    %v1002 = vld [vmem:[%s5 + $0x28] sm:$0xff]
    %v1003 = vld [vmem:[%s5 + $0x30] sm:$0xff]
    %v1004 = vld [vmem:[%s5 + $0x38] sm:$0xff]
    %v1005 = vld [vmem:[%s5 + $0x40] sm:$0xff]
    %v1006 = vld [vmem:[%s5 + $0x48] sm:$0xff]
    %v1007 = vld [vmem:[%s5 + $0x50] sm:$0xff]
    %v1008 = vld [vmem:[%s5 + $0x58] sm:$0xff]
    %v1021 = vunpack.c.l.b16 %v997
    %v1022 = vunpack.c.h.b16 %v997
    %v1023 = vunpack.c.l.b16 %v998
    %v1024 = vunpack.c.h.b16 %v998
    %v1025 = vunpack.c.l.b16 %v999
    %v1026 = vunpack.c.h.b16 %v999
    %v1027 = vunpack.c.l.b16 %v1000
    %v1028 = vunpack.c.h.b16 %v1000
    %v1029 = vunpack.c.l.b16 %v1001
    %v1030 = vunpack.c.h.b16 %v1001
    %v1031 = vunpack.c.l.b16 %v1002
    %v1032 = vunpack.c.h.b16 %v1002
    %v1033 = vunpack.c.l.b16 %v1003
    %v1034 = vunpack.c.h.b16 %v1003
    %v1035 = vunpack.c.l.b16 %v1004
    %v1036 = vunpack.c.h.b16 %v1004
    %v1037 = vunpack.c.l.b16 %v1005
    %v1038 = vunpack.c.h.b16 %v1005
    %v1039 = vunpack.c.l.b16 %v1006
    %v1040 = vunpack.c.h.b16 %v1006
    %v1041 = vunpack.c.l.b16 %v1007
    %v1042 = vunpack.c.h.b16 %v1007
    %v1043 = vunpack.c.l.b16 %v1008
    %v1044 = vunpack.c.h.b16 %v1008
    %v1045 = vpack.c.b16 %v1023, %v1021
    %v1046 = vpack.c.b16 %v1024, %v1022
    %v1047 = vpack.c.b16 %v1027, %v1025
    %v1048 = vpack.c.b16 %v1028, %v1026
    %v1049 = vpack.c.b16 %v1031, %v1029
    %v1050 = vpack.c.b16 %v1032, %v1030
    %v1051 = vpack.c.b16 %v1035, %v1033
    %v1052 = vpack.c.b16 %v1036, %v1034
    %v1053 = vpack.c.b16 %v1039, %v1037
    %v1054 = vpack.c.b16 %v1040, %v1038
    %v1055 = vpack.c.b16 %v1043, %v1041
    %v1056 = vpack.c.b16 %v1044, %v1042
    %1069 = vmatprep.subr.bf16.mxu0 %v1046
    %1070 = vmatpush1.bf16.msra.mxu0 %v1045
    %1071 = vmatprep.subr.bf16.mxu0 %v1048
    %1072 = vmatpush1.bf16.msra.mxu0 %v1047
    %1073 = vmatprep.subr.bf16.mxu0 %v1050
    %1074 = vmatpush1.bf16.msra.mxu0 %v1049
    %1075 = vmatprep.subr.bf16.mxu0 %v1052
    %1076 = vmatpush1.bf16.msra.mxu0 %v1051
    %1077 = vmatprep.subr.bf16.mxu0 %v1054
    %1078 = vmatpush1.bf16.msra.mxu0 %v1053
    %1079 = vmatprep.subr.bf16.mxu0 %v1056
    %1080 = vmatpush1.bf16.msra.mxu0 %v1055
    %1081 = vmatprep.subr.bf16.mxu0 0
    %1082 = vmatpush1.bf16.msra.mxu0 0
    %1083 = vmatprep.subr.bf16.mxu0 0
    %1084 = vmatpush1.bf16.msra.mxu0 0
    %1085 = vmatprep.subr.bf16.mxu0 0
    %1086 = vmatpush1.bf16.msra.mxu0 0
    %1087 = vmatprep.subr.bf16.mxu0 0
    %1088 = vmatpush1.bf16.msra.mxu0 0
    %1089 = vmatprep.subr.bf16.mxu0 0
    %1090 = vmatpush1.bf16.msra.mxu0 0
    %1091 = vmatprep.subr.bf16.mxu0 0
    %1092 = vmatpush1.bf16.msra.mxu0 0
    %1093 = vmatprep.subr.bf16.mxu0 0
    %1094 = vmatpush1.bf16.msra.mxu0 0
    %1095 = vmatprep.subr.bf16.mxu0 0
    %1096 = vmatpush1.bf16.msra.mxu0 0
    %1097 = vmatprep.subr.bf16.mxu0 0
    %1098 = vmatpush1.bf16.msra.mxu0 0
    %1099 = vmatprep.subr.bf16.mxu0 0
    %1100 = vmatpush1.bf16.msra.mxu0 0
    %1101 = vmatprep.mubr.bf16.mxu0 0
    %1102 = vmatmul.mubr.bf16.gmra.mrb[0].mxu0 %v132
    %v1103 = vpop.f32.mrb[0].mxu0
    %v1104 = vadd.f32 0.0, %v1103
    %v1105 = vpop.f32.mrb[0].mxu0
    %v1106 = vadd.f32 0.0, %v1105
    %v1107 = vpop.f32.mrb[0].mxu0
    %v1108 = vadd.f32 0.0, %v1107
    %v1109 = vpop.f32.mrb[0].mxu0
    %v1110 = vadd.f32 0.0, %v1109
    %1111 = vmatprep.mubr.bf16.mxu0 0
    %1112 = vmatmul.mubr.bf16.gmra.mrb[0].mxu0 %v135
    %v1113 = vpop.f32.mrb[0].mxu0
    %v1114 = vadd.f32 0.0, %v1113
    %v1115 = vpop.f32.mrb[0].mxu0
    %v1116 = vadd.f32 0.0, %v1115
    %v1117 = vpop.f32.mrb[0].mxu0
    %v1118 = vadd.f32 0.0, %v1117
    %v1119 = vpop.f32.mrb[0].mxu0
    %v1120 = vadd.f32 0.0, %v1119
    %1121 = vdwg.mxu0
    %v1122 = vadd.f32 %v979, %v1104
    %v1123 = vadd.f32 %v981, %v1106
    %v1124 = vadd.f32 %v983, %v1108
    %v1125 = vadd.f32 %v985, %v1110
    %v1126 = vadd.f32 %v989, %v1114
    %v1127 = vadd.f32 %v991, %v1116
    %v1128 = vadd.f32 %v993, %v1118
    %v1129 = vadd.f32 %v995, %v1120
    %v1130 = vld [vmem:[%s7] sm:$0x3]
    %v1132 = vlaneseq
    %v1133 = vshrl.u32 %v1132, 7
    %v1134 = vsub.s32 0, %v1133
    %v1135 = vrot.slane %v1130, %v1134
    %v1136 = vlaneseq
    %v1137 = vshrl.u32 %v1136, 7
    %v1138 = vsub.s32 1, %v1137
    %v1139 = vrot.slane %v1130, %v1138
    %v1142 = vadd.f32 %v1122, %v1135
    %v1143 = vadd.f32 %v1123, %v1139
    %v1144 = vadd.f32 %v1124, %v1135
    %v1145 = vadd.f32 %v1125, %v1139
    %v1146 = vadd.f32 %v1126, %v1135
    %v1147 = vadd.f32 %v1127, %v1139
    %v1148 = vadd.f32 %v1128, %v1135
    %v1149 = vadd.f32 %v1129, %v1139
    %1154 = vrot.lane.b32.xlu0 %v1142, 64
    %v1155 = vpop.permute.xlu0 %1154
    %1156 = vrot.lane.b32.xlu0 %v1144, 64
    %v1157 = vpop.permute.xlu0 %1156
    %1158 = vrot.lane.b32.xlu0 %v1146, 64
    %v1159 = vpop.permute.xlu0 %1158
    %1160 = vrot.lane.b32.xlu0 %v1148, 64
    %v1161 = vpop.permute.xlu0 %1160
    %v1166 = vmax.f32 %v1142, %v1155
    %v1167 = vmax.f32 %v1144, %v1157
    %v1168 = vmax.f32 %v1146, %v1159
    %v1169 = vmax.f32 %v1148, %v1161
    %v1170 = vmax.f32 %v1166, %v1143
    %v1171 = vmax.f32 %v1167, %v1145
    %v1172 = vmax.f32 %v1168, %v1147
    %v1173 = vmax.f32 %v1169, %v1149
    %1174 = vst.msk [vmem:[%s8] sm:$0xff] %vm758, %v1170
    %1175 = vst.msk [vmem:[%s8 + $0x8] sm:$0xff] %vm758, %v1171
    %1176 = vst.msk [vmem:[%s8 + $0x10] sm:$0xff] %vm758, %v1172
    %1177 = vst.msk [vmem:[%s8 + $0x18] sm:$0xff] %vm758, %v1173
    // Predicated region
    $region38: #{residual_block_apply.1} parent=1 // pred_check
      _
    $region39: #{residual_block_apply.1} parent=1 // pred_check_branch
      %1179 = sbr.rel (0) target = $region41
    $region40: #{residual_block_apply.1} parent=1 // pred_region
      _
    $region41: #{residual_block_apply.1} parent=1 // pred_fallthru
      _
    // Predicated region
    $region42: #{residual_block_apply.1} parent=1 // pred_check
      _
    $region43: #{residual_block_apply.1} parent=1 // pred_check_branch
      %1181 = sbr.rel (0) target = $region45
    $region44: #{residual_block_apply.1} parent=1 // pred_region
      _
    $region45: #{residual_block_apply.1} parent=1 // pred_fallthru
      _
    %1182 = vsyncpa [#allocation3], 1

</llo_original>
